<compile_context>
chip_gen: v7x
topology: tpu7x:2x2x1
jax: 0.10.0
libtpu: 0.0.40
codegen_flags: <defaults>
</compile_context>

<pallas_src>
import functools
import math

import jax
import jax.numpy as jnp
from jax.experimental import pallas as pl
from jax.experimental.pallas import tpu as pltpu


def _round_up(x, m):
    return ((x + m - 1) // m) * m


# ----------------------------------------------------------------------------- kernels
def _gnn_collapsed_kernel(adj_ref, w_ref, b_ref, out_ref, *, compute_dtype):
    # adj_ref : [tm, K]  row tile of the adjacency (native dtype, cast here if requested)
    # w_ref   : [K,  F]  full weight, VMEM-resident across the whole grid
    # b_ref   : [1,  F]  bias (f32)
    # out_ref : [tm, F]
    adj = adj_ref[...]
    if compute_dtype is not None:
        adj = adj.astype(compute_dtype)
    acc = jnp.dot(adj, w_ref[...], preferred_element_type=jnp.float32)
    out_ref[...] = (acc + b_ref[...]).astype(out_ref.dtype)


def _gnn_tiled_kernel(adj_ref, w_ref, b_ref, out_ref, acc_ref, *, compute_dtype):
    # Fallback for very wide layers: (M, F, K) grid, f32 accumulator resident across K.
    kk = pl.program_id(2)

    @pl.when(kk == 0)
    def _():
        # Fold the bias into the accumulator init (no separate finalize add pass).
        acc_ref[...] = jnp.broadcast_to(b_ref[...], acc_ref.shape).astype(jnp.float32)

    adj = adj_ref[...]
    if compute_dtype is not None:
        adj = adj.astype(compute_dtype)
    acc_ref[...] += jnp.dot(adj, w_ref[...], preferred_element_type=jnp.float32)

    @pl.when(kk == pl.num_programs(2) - 1)
    def _():
        out_ref[...] = acc_ref[...].astype(out_ref.dtype)


# ----------------------------------------------------------------------------- wrapper
def gnn_layer_init_forward(adjacent, weight, bias=None, *,
                           compute_dtype=None, out_dtype=jnp.float32,
                           block_m=None, block_n=None, block_k=None,
                           collapse_k_limit=2048, collapse_f_limit=2048,
                           vmem_budget_bytes=36 * 1024 * 1024):
    """output = adjacent @ weight + bias  (bias may be None).

    compute_dtype=None keeps native (f32) numerics; pass jnp.bfloat16 to opt in to
    bf16 inputs with f32 accumulation.
    """
    n, k = adjacent.shape
    k2, f = weight.shape
    assert k == k2, "in_features mismatch"

    w = weight if compute_dtype is None else weight.astype(compute_dtype)
    if bias is None:
        b = jnp.zeros((1, f), jnp.float32)
    else:
        b = bias.reshape(1, f).astype(jnp.float32)

    adj_isz = jnp.dtype(adjacent.dtype).itemsize
    w_isz = jnp.dtype(w.dtype).itemsize
    out_isz = jnp.dtype(out_dtype).itemsize

    weight_fp = 2 * k * f * w_isz + 2 * f * 4     # double-buffer estimate (conservative)
    use_collapsed = (k <= collapse_k_limit and f <= collapse_f_limit
                     and weight_fp <= vmem_budget_bytes // 2)

    def _vmem_limit(footprint):
        return int(min(56 * 2**20, max(2 * footprint + (4 << 20), 32 * 2**20)))

    if use_collapsed:
        # ---- fast path: K and F collapsed, adjacency streams once --------------------
        if block_m is None:
            tm = 8
            for cand in (1024, 512, 256, 128, 64, 32, 16, 8):
                fp = 2 * cand * k * adj_isz + weight_fp + 2 * cand * f * out_isz
                if fp <= vmem_budget_bytes:
                    tm = cand
                    break
        else:
            tm = int(block_m)
        if tm >= n:
            tm = n                                   # full extent: no alignment needed
        else:
            tm = max(8, (tm // 8) * 8)               # keep sublane alignment for tiling
        grid_m = pl.cdiv(n, tm)

        footprint = 2 * tm * k * adj_isz + weight_fp + 2 * tm * f * out_isz
        kernel = functools.partial(_gnn_collapsed_kernel, compute_dtype=compute_dtype)

        return pl.pallas_call(
            kernel,
            out_shape=jax.ShapeDtypeStruct((n, f), out_dtype),
            grid_spec=pltpu.PrefetchScalarGridSpec(
                num_scalar_prefetch=0,
                grid=(grid_m,),
                in_specs=[
                    pl.BlockSpec((tm, k), lambda i: (i, 0)),   # adjacency row tile
                    pl.BlockSpec((k, f), lambda i: (0, 0)),    # full weight (resident)
                    pl.BlockSpec((1, f), lambda i: (0, 0)),    # bias (resident)
                ],
                out_specs=pl.BlockSpec((tm, f), lambda i: (i, 0)),
            ),
            compiler_params=pltpu.CompilerParams(
                dimension_semantics=("parallel",),             # row tiles shard across TCs
                vmem_limit_bytes=_vmem_limit(footprint),
            ),
        )(adjacent, w, b)

    # ---- tiled fallback (very wide layers): (M, F, K) grid with f32 accumulator -------
    tm = int(block_m) if block_m is not None else 512
    tn = int(block_n) if block_n is not None else 512          # multiple of 256 for v6e/v7x MXU
    tk = int(block_k) if block_k is not None else 1024

    tm = n if tm >= n else max(8, (tm // 8) * 8)
    tn = f if tn >= f else max(128, (tn // 128) * 128)
    tk = k if tk >= k else max(128, (tk // 128) * 128)

    adj = adjacent
    k_pad = _round_up(k, tk)
    if k_pad != k:
        # Only the reduction axis needs zero padding for correctness; N and F stay ragged
        # (partial edge blocks only touch rows/cols whose writes are dropped).
        adj = jnp.pad(adj, ((0, 0), (0, k_pad - k)))
        w = jnp.pad(w, ((0, k_pad - k), (0, 0)))

    grid = (pl.cdiv(n, tm), pl.cdiv(f, tn), k_pad // tk)
    footprint = (2 * tm * tk * adj_isz + 2 * tk * tn * w_isz + 2 * tn * 4
                 + 2 * tm * tn * out_isz + tm * tn * 4)
    kernel = functools.partial(_gnn_tiled_kernel, compute_dtype=compute_dtype)

    return pl.pallas_call(
        kernel,
        out_shape=jax.ShapeDtypeStruct((n, f), out_dtype),
        grid_spec=pltpu.PrefetchScalarGridSpec(
            num_scalar_prefetch=0,
            grid=grid,
            in_specs=[
                pl.BlockSpec((tm, tk), lambda i, j, kk: (i, kk)),   # adjacency
                pl.BlockSpec((tk, tn), lambda i, j, kk: (kk, j)),   # weight
                pl.BlockSpec((1, tn), lambda i, j, kk: (0, j)),     # bias
            ],
            out_specs=pl.BlockSpec((tm, tn), lambda i, j, kk: (i, j)),
            scratch_shapes=[pltpu.VMEM((tm, tn), jnp.float32)],
        ),
        compiler_params=pltpu.CompilerParams(
            dimension_semantics=("parallel", "parallel", "arbitrary"),
            vmem_limit_bytes=_vmem_limit(footprint),
        ),
    )(adj, w, b)


def init_params(key, in_features, out_features):
    """Matches GNN_Layer_Init.reset_parameters: uniform(-stdv, stdv), stdv=1/sqrt(out)."""
    stdv = 1.0 / math.sqrt(out_features)
    kw, kb = jax.random.split(key)
    weight = jax.random.uniform(kw, (in_features, out_features), jnp.float32,
                                minval=-stdv, maxval=stdv)
    bias = jax.random.uniform(kb, (out_features,), jnp.float32,
                              minval=-stdv, maxval=stdv)
    return weight, bias


if __name__ == "__main__":
    key = jax.random.PRNGKey(0)
    keys = jax.random.split(key, 8)

    def ref_fwd(adj, w, b):
        out = adj @ w
        return out + b[None, :] if b is not None else out

    # 1) aligned shapes, native f32 compute (matches torch.spmm numerics)
    n, k, f = 128, 64, 128
    adj = jax.random.uniform(keys[0], (n, k), jnp.float32)
    w, b = init_params(keys[1], k, f)
    out = jax.block_until_ready(gnn_layer_init_forward(adj, w, b))
    assert out.shape == (n, f)
    assert jnp.allclose(out, ref_fwd(adj, w, b), atol=1e-5, rtol=1e-5)

    # 2) bf16 compute opt-in (f32 accumulation)
    out_bf = jax.block_until_ready(
        gnn_layer_init_forward(adj, w, b, compute_dtype=jnp.bfloat16))
    assert jnp.allclose(out_bf, ref_fwd(adj, w, b), atol=1e-2, rtol=1e-2)

    # 3) ragged shapes handled with full-extent blocks (no padding, no slicing)
    n2, k2, f2 = 100, 48, 96
    adj2 = jax.random.uniform(keys[2], (n2, k2), jnp.float32)
    w2, b2 = init_params(keys[3], k2, f2)
    out2 = jax.block_until_ready(gnn_layer_init_forward(adj2, w2, b2))
    assert out2.shape == (n2, f2)
    assert jnp.allclose(out2, ref_fwd(adj2, w2, b2), atol=1e-5, rtol=1e-5)

    # 4) ragged N with partial row tiles (forced cdiv grid over rows)
    n3 = 200
    adj3 = jax.random.uniform(keys[4], (n3, k), jnp.float32)
    out3 = jax.block_until_ready(gnn_layer_init_forward(adj3, w, b, block_m=128))
    assert out3.shape == (n3, f)
    assert jnp.allclose(out3, ref_fwd(adj3, w, b), atol=1e-5, rtol=1e-5)

    # 5) tiled fallback path (forced) with a ragged, zero-padded K reduction
    n4, k4, f4 = 96, 160, 96
    adj4 = jax.random.uniform(keys[5], (n4, k4), jnp.float32)
    w4, b4 = init_params(keys[6], k4, f4)
    out4 = jax.block_until_ready(
        gnn_layer_init_forward(adj4, w4, b4, block_k=128, collapse_k_limit=64))
    assert out4.shape == (n4, f4)
    assert jnp.allclose(out4, ref_fwd(adj4, w4, b4), atol=1e-5, rtol=1e-5)

    # 6) bias=None (module with bias=False)
    out5 = jax.block_until_ready(gnn_layer_init_forward(adj, w, None))
    assert jnp.allclose(out5, adj @ w, atol=1e-5, rtol=1e-5)

    print("KERNEL_OK")
</pallas_src>

<mosaic_0001>
module attributes {stable_mosaic.version = 11 : i64} {
  func.func @_gnn_collapsed_kernel(%arg0: i32, %arg1: memref<128x64xf32, #tpu.memory_space<vmem>>, %arg2: memref<64x128xf32, #tpu.memory_space<vmem>>, %arg3: memref<1x128xf32, #tpu.memory_space<vmem>>, %arg4: memref<128x128xf32, #tpu.memory_space<vmem>>) attributes {dimension_semantics = [#tpu.dimension_semantics<parallel>], iteration_bounds = array<i64: 1>, scalar_prefetch = 0 : i64, scratch_operands = 0 : i64, tpu.core_type = #tpu.core_type<tc>, window_params = [{transform_indices = @transform_0, window_bounds = array<i64: 128, 64>}, {pipeline_mode = #tpu.pipeline_mode<synchronous>, transform_indices = @transform_1, window_bounds = array<i64: 64, 128>}, {pipeline_mode = #tpu.pipeline_mode<synchronous>, transform_indices = @transform_2, window_bounds = array<i64: 1, 128>}, {transform_indices = @transform_3, window_bounds = array<i64: 128, 128>}]} {
    %c0 = arith.constant 0 : index
    %c0_0 = arith.constant 0 : index
    %0 = vector.load %arg1[%c0, %c0_0] : memref<128x64xf32, #tpu.memory_space<vmem>>, vector<128x64xf32>
    %c0_1 = arith.constant 0 : index
    %c0_2 = arith.constant 0 : index
    %1 = vector.load %arg2[%c0_1, %c0_2] : memref<64x128xf32, #tpu.memory_space<vmem>>, vector<64x128xf32>
    %cst = arith.constant dense<0.000000e+00> : vector<128x128xf32>
    %2 = tpu.matmul %0, %1, %cst {dimension_numbers = #tpu.dot_dimension_numbers<[1], [0], [0], [1], [0, 0, 1, 1], [], []>} : vector<128x64xf32>, vector<64x128xf32>, vector<128x128xf32> -> vector<128x128xf32>
    %c0_3 = arith.constant 0 : index
    %c0_4 = arith.constant 0 : index
    %3 = vector.load %arg3[%c0_3, %c0_4] : memref<1x128xf32, #tpu.memory_space<vmem>>, vector<1x128xf32>
    %4 = vector.broadcast %3 : vector<1x128xf32> to vector<128x128xf32>
    %5 = arith.addf %2, %4 : vector<128x128xf32>
    %c0_5 = arith.constant 0 : index
    %c0_6 = arith.constant 0 : index
    %6 = vector.load %arg4[%c0_5, %c0_6] : memref<128x128xf32, #tpu.memory_space<vmem>>, vector<128x128xf32>
    tpu.vector_store %arg4[%c0_5, %c0_6], %5 {strides = array<i32>} : memref<128x128xf32, #tpu.memory_space<vmem>>, vector<128x128xf32>,
    return
  }
  func.func @transform_0(%arg0: i32) -> (i32, i32) {
    %c0_i32 = arith.constant 0 : i32
    %c0_i32_0 = arith.constant 0 : i32
    return %arg0, %c0_i32 : i32, i32
  }
  func.func @transform_1(%arg0: i32) -> (i32, i32) {
    %c0_i32 = arith.constant 0 : i32
    %c0_i32_0 = arith.constant 0 : i32
    %c0_i32_1 = arith.constant 0 : i32
    return %c0_i32, %c0_i32_0 : i32, i32
  }
  func.func @transform_2(%arg0: i32) -> (i32, i32) {
    %c0_i32 = arith.constant 0 : i32
    %c0_i32_0 = arith.constant 0 : i32
    %c0_i32_1 = arith.constant 0 : i32
    return %c0_i32, %c0_i32_0 : i32, i32
  }
  func.func @transform_3(%arg0: i32) -> (i32, i32) {
    %c0_i32 = arith.constant 0 : i32
    %c0_i32_0 = arith.constant 0 : i32
    return %arg0, %c0_i32 : i32, i32
  }
}

</mosaic_0001>

<llo_original>
// kernel: tpu_custom_call.1
$region0: #{tpu_custom_call.1}
  #allocation0 [shape = 'u32[]', space=smem, size = 0x4, offset = 0x4, fixed_abs, tag = 'smem constant byte address 0x4 - core index']
  #allocation1 [shape = 'u32[144,128]{1,0:T(1,128)}', space=vmem, size = 0x12000, scoped, tag = 'internal scratch']
  %s0 = inlined_call_operand.vmem [shape: f32[128,64], index: 0, kind: input, shape index: {}]
  %s1 = inlined_call_operand.vmem [shape: f32[64,128], index: 1, kind: input, shape index: {}]
  %s2 = inlined_call_operand.vmem [shape: f32[1,128], index: 2, kind: input, shape index: {}]
  %s3 = inlined_call_operand.hbm [shape: f32[128,128], index: 3, kind: output, shape index: {}]
  %s4 = sld [smem:[#allocation0]]
  $region22: #{tpu_custom_call.1} parent=0
    _
  %s6 = ssub.s32 1, %s4
  %s7 = scalar_select 0, %s6, %s4
  $region1: #{tpu_custom_call.1} parent=0
    #allocation2 [shape = 'u8[65536]{0}', space=vmem, size = 0x10000, scoped, tag = 'output window, operand 0, single buffered']
    #allocation3 [shape = 's32[1]{0}', space=sflag, size = 0x4, scoped, tag = 'scoped memory for tpu_custom_call.1']
    %8 = vsyncpa [#allocation3], 0
    // Predicated region
    $region2: #{tpu_custom_call.1} parent=1 // pred_check
      _
    $region3: #{tpu_custom_call.1} parent=1 // pred_check_branch
      %10 = sbr.rel (0) target = $region5
    $region4: #{tpu_custom_call.1} parent=1 // pred_region
      _
    $region5: #{tpu_custom_call.1} parent=1 // pred_fallthru
      _
    // Predicated region
    $region6: #{tpu_custom_call.1} parent=1 // pred_check
      _
    $region7: #{tpu_custom_call.1} parent=1 // pred_check_branch
      %12 = sbr.rel (0) target = $region9
    $region8: #{tpu_custom_call.1} parent=1 // pred_region
      _
    $region9: #{tpu_custom_call.1} parent=1 // pred_fallthru
      _
    // Predicated region
    $region10: #{tpu_custom_call.1} parent=1 // pred_check
      _
    $region11: #{tpu_custom_call.1} parent=1 // pred_check_branch
      %14 = sbr.rel (0) target = $region13
    $region12: #{tpu_custom_call.1} parent=1 // pred_region
      _
    $region13: #{tpu_custom_call.1} parent=1 // pred_fallthru
      _
    %v15 = vld [vmem:[%s0] sm:$0xff]
    %v16 = vld [vmem:[%s0 + $0x8] sm:$0xff]
    %v17 = vld [vmem:[%s0 + $0x10] sm:$0xff]
    %v18 = vld [vmem:[%s0 + $0x18] sm:$0xff]
    %v19 = vld [vmem:[%s0 + $0x20] sm:$0xff]
    %v20 = vld [vmem:[%s0 + $0x28] sm:$0xff]
    %v21 = vld [vmem:[%s0 + $0x30] sm:$0xff]
    %v22 = vld [vmem:[%s0 + $0x38] sm:$0xff]
    %v23 = vld [vmem:[%s0 + $0x40] sm:$0xff]
    %v24 = vld [vmem:[%s0 + $0x48] sm:$0xff]
    %v25 = vld [vmem:[%s0 + $0x50] sm:$0xff]
    %v26 = vld [vmem:[%s0 + $0x58] sm:$0xff]
    %v27 = vld [vmem:[%s0 + $0x60] sm:$0xff]
    %v28 = vld [vmem:[%s0 + $0x68] sm:$0xff]
    %v29 = vld [vmem:[%s0 + $0x70] sm:$0xff]
    %v30 = vld [vmem:[%s0 + $0x78] sm:$0xff]
    %v31 = vld [vmem:[%s1] sm:$0xff]
    %v32 = vld [vmem:[%s1 + $0x8] sm:$0xff]
    %v33 = vld [vmem:[%s1 + $0x10] sm:$0xff]
    %v34 = vld [vmem:[%s1 + $0x18] sm:$0xff]
    %v35 = vld [vmem:[%s1 + $0x20] sm:$0xff]
    %v36 = vld [vmem:[%s1 + $0x28] sm:$0xff]
    %v37 = vld [vmem:[%s1 + $0x30] sm:$0xff]
    %v38 = vld [vmem:[%s1 + $0x38] sm:$0xff]
    %v39 = vld [vmem:[%s2] sm:$0x1]
    %v41 = vlaneseq
    %v42 = vshrl.u32 %v41, 7
    %v43 = vsub.s32 0, %v42
    %v44 = vrot.slane %v39, %v43
    %vm46 = vcmask 523264
    %v48 = vsel %vm46, %v15, 0
    %v51 = vsel %vm46, %v16, 0
    %v54 = vsel %vm46, %v17, 0
    %v57 = vsel %vm46, %v18, 0
    %v60 = vsel %vm46, %v19, 0
    %v63 = vsel %vm46, %v20, 0
    %v66 = vsel %vm46, %v21, 0
    %v69 = vsel %vm46, %v22, 0
    %v72 = vsel %vm46, %v23, 0
    %v75 = vsel %vm46, %v24, 0
    %v78 = vsel %vm46, %v25, 0
    %v81 = vsel %vm46, %v26, 0
    %v84 = vsel %vm46, %v27, 0
    %v87 = vsel %vm46, %v28, 0
    %v90 = vsel %vm46, %v29, 0
    %v93 = vsel %vm46, %v30, 0
    %95 = vmatprep.subr.mxu0 0.0
    %96 = vmatpush1.msra.mxu0 %v31
    %97 = vmatprep.subr.mxu0 0.0
    %98 = vmatpush1.msra.mxu0 %v32
    %99 = vmatprep.subr.mxu0 0.0
    %100 = vmatpush1.msra.mxu0 %v33
    %101 = vmatprep.subr.mxu0 0.0
    %102 = vmatpush1.msra.mxu0 %v34
    %103 = vmatprep.subr.mxu0 0.0
    %104 = vmatpush1.msra.mxu0 %v35
    %105 = vmatprep.subr.mxu0 0.0
    %106 = vmatpush1.msra.mxu0 %v36
    %107 = vmatprep.subr.mxu0 0.0
    %108 = vmatpush1.msra.mxu0 %v37
    %109 = vmatprep.subr.mxu0 0.0
    %110 = vmatpush1.msra.mxu0 %v38
    %111 = vmatprep.subr.mxu0 0.0
    %112 = vmatpush1.msra.mxu0 0.0
    %113 = vmatprep.subr.mxu0 0.0
    %114 = vmatpush1.msra.mxu0 0.0
    %115 = vmatprep.subr.mxu0 0.0
    %116 = vmatpush1.msra.mxu0 0.0
    %117 = vmatprep.subr.mxu0 0.0
    %118 = vmatpush1.msra.mxu0 0.0
    %119 = vmatprep.subr.mxu0 0.0
    %120 = vmatpush1.msra.mxu0 0.0
    %121 = vmatprep.subr.mxu0 0.0
    %122 = vmatpush1.msra.mxu0 0.0
    %123 = vmatprep.subr.mxu0 0.0
    %124 = vmatpush1.msra.mxu0 0.0
    %125 = vmatprep.subr.mxu0 0.0
    %126 = vmatpush1.msra.mxu0 0.0
    %127 = vmatprep.subr.mxu0 0.0
    %128 = vmatpush1.msra.mxu0 0.0
    %129 = vmatprep.subr.mxu0 0.0
    %130 = vmatpush1.msra.mxu0 0.0
    %131 = vmatprep.subr.mxu0 0.0
    %132 = vmatpush1.msra.mxu0 0.0
    %133 = vmatprep.subr.mxu0 0.0
    %134 = vmatpush1.msra.mxu0 0.0
    %135 = vmatprep.subr.mxu0 0.0
    %136 = vmatpush1.msra.mxu0 0.0
    %137 = vmatprep.subr.mxu0 0.0
    %138 = vmatpush1.msra.mxu0 0.0
    %139 = vmatprep.subr.mxu0 0.0
    %140 = vmatpush1.msra.mxu0 0.0
    %141 = vmatprep.subr.mxu0 0.0
    %142 = vmatpush1.msra.mxu0 0.0
    %143 = vmatprep.subr.mxu0 0.0
    %144 = vmatpush1.msra.mxu0 0.0
    %145 = vmatprep.subr.mxu0 0.0
    %146 = vmatpush1.msra.mxu0 0.0
    %147 = vmatprep.subr.mxu0 0.0
    %148 = vmatpush1.msra.mxu0 0.0
    %149 = vmatprep.subr.mxu0 0.0
    %150 = vmatpush1.msra.mxu0 0.0
    %151 = vmatprep.subr.mxu0 0.0
    %152 = vmatpush1.msra.mxu0 0.0
    %153 = vmatprep.subr.mxu0 0.0
    %154 = vmatpush1.msra.mxu0 0.0
    %155 = vmatprep.subr.mxu0 0.0
    %156 = vmatpush1.msra.mxu0 0.0
    %157 = vmatprep.subr.mxu0 0.0
    %158 = vmatpush1.msra.mxu0 0.0
    %159 = vmatprep.mubr.f32.mxu0 0.0
    %160 = vmatmul.mubr.f32.gmra.mrb[0].mxu0 %v48
    %v161 = vpop.f32.mrb[0].mxu0
    %v162 = vadd.f32 %v44, %v161
    %v163 = vpop.f32.mrb[0].mxu0
    %164 = vmatprep.mubr.f32.mxu0 0.0
    %165 = vmatmul.mubr.f32.gmra.mrb[0].mxu0 %v51
    %v166 = vpop.f32.mrb[0].mxu0
    %v167 = vadd.f32 %v44, %v166
    %v168 = vpop.f32.mrb[0].mxu0
    %169 = vmatprep.mubr.f32.mxu0 0.0
    %170 = vmatmul.mubr.f32.gmra.mrb[0].mxu0 %v54
    %v171 = vpop.f32.mrb[0].mxu0
    %v172 = vadd.f32 %v44, %v171
    %v173 = vpop.f32.mrb[0].mxu0
    %174 = vmatprep.mubr.f32.mxu0 0.0
    %175 = vmatmul.mubr.f32.gmra.mrb[0].mxu0 %v57
    %v176 = vpop.f32.mrb[0].mxu0
    %v177 = vadd.f32 %v44, %v176
    %v178 = vpop.f32.mrb[0].mxu0
    %179 = vmatprep.mubr.f32.mxu0 0.0
    %180 = vmatmul.mubr.f32.gmra.mrb[0].mxu0 %v60
    %v181 = vpop.f32.mrb[0].mxu0
    %v182 = vadd.f32 %v44, %v181
    %v183 = vpop.f32.mrb[0].mxu0
    %184 = vmatprep.mubr.f32.mxu0 0.0
    %185 = vmatmul.mubr.f32.gmra.mrb[0].mxu0 %v63
    %v186 = vpop.f32.mrb[0].mxu0
    %v187 = vadd.f32 %v44, %v186
    %v188 = vpop.f32.mrb[0].mxu0
    %189 = vmatprep.mubr.f32.mxu0 0.0
    %190 = vmatmul.mubr.f32.gmra.mrb[0].mxu0 %v66
    %v191 = vpop.f32.mrb[0].mxu0
    %v192 = vadd.f32 %v44, %v191
    %v193 = vpop.f32.mrb[0].mxu0
    %194 = vmatprep.mubr.f32.mxu0 0.0
    %195 = vmatmul.mubr.f32.gmra.mrb[0].mxu0 %v69
    %v196 = vpop.f32.mrb[0].mxu0
    %v197 = vadd.f32 %v44, %v196
    %v198 = vpop.f32.mrb[0].mxu0
    %199 = vmatprep.mubr.f32.mxu0 0.0
    %200 = vmatmul.mubr.f32.gmra.mrb[0].mxu0 %v72
    %v201 = vpop.f32.mrb[0].mxu0
    %v202 = vadd.f32 %v44, %v201
    %v203 = vpop.f32.mrb[0].mxu0
    %204 = vmatprep.mubr.f32.mxu0 0.0
    %205 = vmatmul.mubr.f32.gmra.mrb[0].mxu0 %v75
    %v206 = vpop.f32.mrb[0].mxu0
    %v207 = vadd.f32 %v44, %v206
    %v208 = vpop.f32.mrb[0].mxu0
    %209 = vmatprep.mubr.f32.mxu0 0.0
    %210 = vmatmul.mubr.f32.gmra.mrb[0].mxu0 %v78
    %v211 = vpop.f32.mrb[0].mxu0
    %v212 = vadd.f32 %v44, %v211
    %v213 = vpop.f32.mrb[0].mxu0
    %214 = vmatprep.mubr.f32.mxu0 0.0
    %215 = vmatmul.mubr.f32.gmra.mrb[0].mxu0 %v81
    %v216 = vpop.f32.mrb[0].mxu0
    %v217 = vadd.f32 %v44, %v216
    %v218 = vpop.f32.mrb[0].mxu0
    %219 = vmatprep.mubr.f32.mxu0 0.0
    %220 = vmatmul.mubr.f32.gmra.mrb[0].mxu0 %v84
    %v221 = vpop.f32.mrb[0].mxu0
    %v222 = vadd.f32 %v44, %v221
    %v223 = vpop.f32.mrb[0].mxu0
    %224 = vmatprep.mubr.f32.mxu0 0.0
    %225 = vmatmul.mubr.f32.gmra.mrb[0].mxu0 %v87
    %v226 = vpop.f32.mrb[0].mxu0
    %v227 = vadd.f32 %v44, %v226
    %v228 = vpop.f32.mrb[0].mxu0
    %229 = vmatprep.mubr.f32.mxu0 0.0
    %230 = vmatmul.mubr.f32.gmra.mrb[0].mxu0 %v90
    %v231 = vpop.f32.mrb[0].mxu0
    %v232 = vadd.f32 %v44, %v231
    %v233 = vpop.f32.mrb[0].mxu0
    %234 = vmatprep.mubr.f32.mxu0 0.0
    %235 = vmatmul.mubr.f32.gmra.mrb[0].mxu0 %v93
    %v236 = vpop.f32.mrb[0].mxu0
    %v237 = vadd.f32 %v44, %v236
    %v238 = vpop.f32.mrb[0].mxu0
    %239 = vdwg.mxu0
    %240 = vst [vmem:[#allocation2] sm:$0xff] %v162
    %241 = vst [vmem:[#allocation2 + $0x8] sm:$0xff] %v167
    %242 = vst [vmem:[#allocation2 + $0x10] sm:$0xff] %v172
    %243 = vst [vmem:[#allocation2 + $0x18] sm:$0xff] %v177
    %244 = vst [vmem:[#allocation2 + $0x20] sm:$0xff] %v182
    %245 = vst [vmem:[#allocation2 + $0x28] sm:$0xff] %v187
    %246 = vst [vmem:[#allocation2 + $0x30] sm:$0xff] %v192
    %247 = vst [vmem:[#allocation2 + $0x38] sm:$0xff] %v197
    %248 = vst [vmem:[#allocation2 + $0x40] sm:$0xff] %v202
    %249 = vst [vmem:[#allocation2 + $0x48] sm:$0xff] %v207
    %250 = vst [vmem:[#allocation2 + $0x50] sm:$0xff] %v212
    %251 = vst [vmem:[#allocation2 + $0x58] sm:$0xff] %v217
    %252 = vst [vmem:[#allocation2 + $0x60] sm:$0xff] %v222
    %253 = vst [vmem:[#allocation2 + $0x68] sm:$0xff] %v227
    %254 = vst [vmem:[#allocation2 + $0x70] sm:$0xff] %v232
    %255 = vst [vmem:[#allocation2 + $0x78] sm:$0xff] %v237
    // Predicated region
    $region14: #{tpu_custom_call.1} parent=1 // pred_check
      _
    $region15: #{tpu_custom_call.1} parent=1 // pred_check_branch
      %257 = sbr.rel (0) target = $region17
    $region16: #{tpu_custom_call.1} parent=1 // pred_region
      %s259 = ssub.s32 2048, 2048
      %260 = vsyncadd [#allocation3], %s259
      %s261 = sshll.u32 [#allocation2], 4
      %s262 = int_to_ptr.vmem [resolvable:$true] %s261
      %267 = dma.vmem_to_hbm [thread:$0]  %s262, 2048, %s3, [#allocation3], 128, 128, 8
    $region17: #{tpu_custom_call.1} parent=1 // pred_fallthru
      _
    // Predicated region
    $region18: #{tpu_custom_call.1} parent=1 // pred_check
      _
    $region19: #{tpu_custom_call.1} parent=1 // pred_check_branch
      %269 = sbr.rel (0) target = $region21
    $region20: #{tpu_custom_call.1} parent=1 // pred_region
      %270 = dma.done [#allocation3], 2048
    $region21: #{tpu_custom_call.1} parent=1 // pred_fallthru
      _
    %271 = vsyncpa [#allocation3], 1

</llo_original>
